<compile_context>
chip_gen: v7x
topology: tpu7x:2x2x1
jax: 0.10.0
libtpu: 0.0.40
codegen_flags: <defaults>
</compile_context>

<pallas_src>
import functools

import jax
import jax.numpy as jnp
from jax.experimental import pallas as pl
from jax.experimental.pallas import tpu as pltpu

_LANES = 128
_TARGET_BLOCK_BYTES = 1 << 20   # ~1 MiB per input block (dtype-scaled row tile)


def _bce_partial_kernel(pred_ref, target_ref, out_ref, *,
                        full_rows, rem_lanes, tiles_per_group, total_tiles):
    """Accumulates an (8, 128) vreg-shaped partial sum of BCE-with-logits losses."""
    c = pl.program_id(0)               # TensorCore group axis ("parallel")
    i = pl.program_id(1)               # row-tile axis ("arbitrary" reduction)

    @pl.when(i == 0)
    def _():
        out_ref[...] = jnp.zeros_like(out_ref)

    block_idx = c * tiles_per_group + i

    x = pred_ref[...].astype(jnp.float32)
    y = target_ref[...].astype(jnp.float32)
    # max(x,0) - x*y + log1p(exp(-|x|))
    loss = jnp.maximum(x, 0.0) - x * y + jnp.log1p(jnp.exp(-jnp.abs(x)))

    rows_blk, lanes = loss.shape
    tile_row_start = block_idx * rows_blk      # row-level index: no int32 overflow risk

    def accumulate(vals):
        # Leading-axis sums are plain VPU vreg adds (no cross-lane XLU work).
        r8 = (rows_blk // 8) * 8
        if r8 > 0:
            out_ref[...] += vals[:r8].reshape(r8 // 8, 8, lanes).sum(axis=0)
        if r8 < rows_blk:                      # tiny (<8-row) trailer; static branch
            out_ref[0:1, :] += vals[r8:].sum(axis=0, keepdims=True)

    # A tile is "clean" iff it is a real (non-duplicate) tile and every row it
    # covers lies strictly before the (possibly partial) last data row.
    is_real = block_idx < total_tiles
    clean = jnp.logical_and(is_real, tile_row_start + rows_blk <= full_rows)

    @pl.when(clean)
    def _():                                   # hot path: no mask math at all
        accumulate(loss)

    @pl.when(jnp.logical_not(clean))
    def _():                                   # at most one real tile + duplicate steps
        row_idx = tile_row_start + jax.lax.broadcasted_iota(
            jnp.int32, (rows_blk, lanes), 0)
        lane_idx = jax.lax.broadcasted_iota(jnp.int32, (rows_blk, lanes), 1)
        valid = jnp.logical_or(
            row_idx < full_rows,
            jnp.logical_and(row_idx == full_rows, lane_idx < rem_lanes))
        valid = jnp.logical_and(valid, is_real)  # duplicate steps contribute nothing
        # Select (not arithmetic) discards garbage/NaN from boundary-block reads.
        accumulate(jnp.where(valid, loss, 0.0))


def _num_tc_groups():
    """2 on dual-TensorCore chips (v7x), else 1 (v5e/v6e have a single TC)."""
    try:
        kind = jax.devices()[0].device_kind.lower()
    except Exception:
        return 1
    return 2 if ("v7" in kind or "7x" in kind) else 1


def _cdiv(a, b):
    return -(-a // b)


@functools.partial(jax.jit, static_argnames=("reduction",))
def binary_cross_entropy_loss(pred, target, reduction="mean"):
    """JAX/Pallas equivalent of BinaryCrossEntropyLoss.forward."""
    assert pred.shape == target.shape, "pred/target must have the same shape"
    n = pred.size
    full_rows, rem_lanes = divmod(n, _LANES)
    rows = _cdiv(n, _LANES)
    padded_n = rows * _LANES

    flat_p = pred.reshape(-1)
    flat_t = target.reshape(-1)
    if padded_n != n:
        # Minimal pad (<128 elements) only for non-lane-aligned sizes.
        # TODO(synk): a fully copy-free ragged path would need a 1-D/manual-DMA kernel.
        flat_p = jnp.pad(flat_p, (0, padded_n - n))
        flat_t = jnp.pad(flat_t, (0, padded_n - n))
    p2 = flat_p.reshape(rows, _LANES)          # free reshape when no pad was needed
    t2 = flat_t.reshape(rows, _LANES)

    # Dtype-scaled row tile: ~1 MiB per input block (f32: 2048 rows, bf16: 4096).
    itemsize = max(jnp.dtype(pred.dtype).itemsize, jnp.dtype(target.dtype).itemsize)
    target_rows = max(8, _TARGET_BLOCK_BYTES // (_LANES * itemsize))
    row_tile = rows if rows <= target_rows else target_rows  # boundary block covers rest

    total_tiles = _cdiv(rows, row_tile)
    num_groups = _num_tc_groups() if total_tiles >= 2 else 1
    tiles_per_group = _cdiv(total_tiles, num_groups)

    if num_groups == 1:
        in_idx = lambda c, i: (i, 0)
    else:
        # Clamp so duplicate steps (odd tile count) stay in bounds; the kernel
        # masks their contribution to zero.
        in_idx = lambda c, i: (jnp.minimum(c * tiles_per_group + i, total_tiles - 1), 0)

    kernel = functools.partial(
        _bce_partial_kernel,
        full_rows=full_rows, rem_lanes=rem_lanes,
        tiles_per_group=tiles_per_group, total_tiles=total_tiles)

    cost = pl.CostEstimate(
        flops=7 * n,
        transcendentals=2 * n,
        bytes_accessed=n * (jnp.dtype(pred.dtype).itemsize
                            + jnp.dtype(target.dtype).itemsize)
                       + num_groups * 8 * _LANES * 4,
    )

    partials = pl.pallas_call(
        kernel,
        out_shape=jax.ShapeDtypeStruct((num_groups, 8, _LANES), jnp.float32),
        grid_spec=pltpu.PrefetchScalarGridSpec(
            num_scalar_prefetch=0,
            grid=(num_groups, tiles_per_group),
            in_specs=[
                pl.BlockSpec((row_tile, _LANES), in_idx),
                pl.BlockSpec((row_tile, _LANES), in_idx),
            ],
            out_specs=pl.BlockSpec((None, 8, _LANES), lambda c, i: (c, 0, 0)),
        ),
        compiler_params=pltpu.CompilerParams(
            dimension_semantics=("parallel", "arbitrary"),
            vmem_limit_bytes=32 * 1024 * 1024,
        ),
        cost_estimate=cost,
    )(p2, t2)

    loss_sum = jnp.sum(partials)   # single cross-lane reduce, outside the grid loop
    if reduction == "mean":
        return loss_sum / n
    elif reduction == "sum":
        return loss_sum
    else:
        # TODO(synk): reduction='none' would need an elementwise-output kernel.
        raise ValueError(f"unsupported reduction: {reduction}")


def _reference_bce(pred, target):
    x = pred.astype(jnp.float32)
    y = target.astype(jnp.float32)
    loss = jnp.maximum(x, 0.0) - x * y + jnp.log1p(jnp.exp(-jnp.abs(x)))
    return jnp.mean(loss)


if __name__ == "__main__":
    key = jax.random.PRNGKey(0)
    k1, k2, k3, k4, k5, k6 = jax.random.split(key, 6)

    # Case 1: NCHW-like f32 (batch=2, channels=4, spatial=16x16) -- lane-aligned,
    # zero-copy path (no pad at all).
    pred = jax.random.normal(k1, (2, 4, 16, 16), dtype=jnp.float32)
    target = (jax.random.uniform(k2, (2, 4, 16, 16)) > 0.5).astype(jnp.float32)
    out = jax.block_until_ready(binary_cross_entropy_loss(pred, target, reduction="mean"))
    ref = _reference_bce(pred, target)
    assert jnp.allclose(out, ref, rtol=1e-5, atol=1e-5), (out, ref)

    # Case 2: ragged size + bf16 inputs (minimal lane pad + in-kernel lane mask,
    # native-dtype streaming, non-multiple-of-8 row count).
    pred_b = jax.random.normal(k3, (3, 5, 7, 11), dtype=jnp.bfloat16)
    target_b = (jax.random.uniform(k4, (3, 5, 7, 11)) > 0.5).astype(jnp.bfloat16)
    out_b = jax.block_until_ready(binary_cross_entropy_loss(pred_b, target_b, reduction="mean"))
    ref_b = _reference_bce(pred_b, target_b)
    assert jnp.allclose(out_b, ref_b, rtol=1e-4, atol=1e-5), (out_b, ref_b)

    # Case 3: larger input whose row count is not a multiple of the row tile --
    # exercises the Pallas boundary-block path (garbage rows discarded by select).
    pred_c = jax.random.normal(k5, (2, 4, 192, 192), dtype=jnp.float32)
    target_c = (jax.random.uniform(k6, (2, 4, 192, 192)) > 0.5).astype(jnp.float32)
    out_c = jax.block_until_ready(binary_cross_entropy_loss(pred_c, target_c, reduction="mean"))
    ref_c = _reference_bce(pred_c, target_c)
    assert jnp.allclose(out_c, ref_c, rtol=1e-5, atol=1e-5), (out_c, ref_c)

    # reduction='sum' sanity check.
    out_s = jax.block_until_ready(binary_cross_entropy_loss(pred, target, reduction="sum"))
    assert jnp.allclose(out_s, ref * pred.size, rtol=1e-5, atol=1e-4), (out_s, ref * pred.size)

    print("KERNEL_OK")
</pallas_src>

<mosaic_0001>
module attributes {stable_mosaic.version = 11 : i64} {
  func.func @_bce_partial_kernel(%arg0: i32, %arg1: i32, %arg2: memref<16x128xf32, #tpu.memory_space<vmem>>, %arg3: memref<16x128xf32, #tpu.memory_space<vmem>>, %arg4: memref<1x8x128xf32, #tpu.memory_space<vmem>>) attributes {dimension_semantics = [#tpu.dimension_semantics<parallel>, #tpu.dimension_semantics<arbitrary>], iteration_bounds = array<i64: 1, 1>, scalar_prefetch = 0 : i64, scratch_operands = 0 : i64, tpu.core_type = #tpu.core_type<tc>, window_params = [{transform_indices = @transform_0, window_bounds = array<i64: 16, 128>}, {transform_indices = @transform_1, window_bounds = array<i64: 16, 128>}, {transform_indices = @transform_2, window_bounds = array<i64: 1, 8, 128>}]} {
    %c0_i32 = arith.constant 0 : i32
    %0 = arith.cmpi eq, %arg1, %c0_i32 : i32
    %1 = arith.extui %0 : i1 to i32
    %c0_i32_0 = arith.constant 0 : i32
    %2 = arith.cmpi ne, %1, %c0_i32_0 : i32
    scf.if %2 {
      %cst_10 = arith.constant 0.000000e+00 : f32
      %27 = vector.broadcast %cst_10 : f32 to vector<8x128xf32>
      %c0_11 = arith.constant 0 : index
      %c0_12 = arith.constant 0 : index
      %c0_13 = arith.constant 0 : index
      %28 = vector.load %arg4[%c0_11, %c0_12, %c0_13] : memref<1x8x128xf32, #tpu.memory_space<vmem>>, vector<1x8x128xf32>
      %29 = vector.shape_cast %28 : vector<1x8x128xf32> to vector<8x128xf32>
      %30 = vector.shape_cast %27 : vector<8x128xf32> to vector<1x8x128xf32>
      tpu.vector_store %arg4[%c0_11, %c0_12, %c0_13], %30 {strides = array<i32>} : memref<1x8x128xf32, #tpu.memory_space<vmem>>, vector<1x8x128xf32>,
    } else {
    }
    %c1_i32 = arith.constant 1 : i32
    %3 = arith.muli %arg0, %c1_i32 : i32
    %4 = arith.addi %3, %arg1 : i32
    %c0 = arith.constant 0 : index
    %c0_1 = arith.constant 0 : index
    %5 = vector.load %arg2[%c0, %c0_1] : memref<16x128xf32, #tpu.memory_space<vmem>>, vector<16x128xf32>
    %c0_2 = arith.constant 0 : index
    %c0_3 = arith.constant 0 : index
    %6 = vector.load %arg3[%c0_2, %c0_3] : memref<16x128xf32, #tpu.memory_space<vmem>>, vector<16x128xf32>
    %cst = arith.constant 0.000000e+00 : f32
    %7 = vector.broadcast %cst : f32 to vector<16x128xf32>
    %8 = arith.maximumf %5, %7 : vector<16x128xf32>
    %9 = arith.mulf %5, %6 : vector<16x128xf32>
    %10 = arith.subf %8, %9 : vector<16x128xf32>
    %11 = math.absf %5 : vector<16x128xf32>
    %cst_4 = arith.constant 0.000000e+00 : f32
    %12 = vector.broadcast %cst_4 : f32 to vector<16x128xf32>
    %13 = arith.subf %12, %11 : vector<16x128xf32>
    %14 = math.exp %13 : vector<16x128xf32>
    %15 = math.log1p %14 : vector<16x128xf32>
    %16 = arith.addf %10, %15 : vector<16x128xf32>
    %c16_i32 = arith.constant 16 : i32
    %17 = arith.muli %4, %c16_i32 : i32
    %c1_i32_5 = arith.constant 1 : i32
    %18 = arith.cmpi slt, %4, %c1_i32_5 : i32
    %c16_i32_6 = arith.constant 16 : i32
    %19 = arith.addi %17, %c16_i32_6 : i32
    %c16_i32_7 = arith.constant 16 : i32
    %20 = arith.cmpi sle, %19, %c16_i32_7 : i32
    %21 = arith.andi %18, %20 : i1
    %22 = arith.extui %21 : i1 to i32
    %c0_i32_8 = arith.constant 0 : i32
    %23 = arith.cmpi ne, %22, %c0_i32_8 : i32
    scf.if %23 {
      %c0_10 = arith.constant 0 : index
      %c0_11 = arith.constant 0 : index
      %c0_12 = arith.constant 0 : index
      %27 = vector.load %arg4[%c0_10, %c0_11, %c0_12] : memref<1x8x128xf32, #tpu.memory_space<vmem>>, vector<1x8x128xf32>
      %28 = vector.shape_cast %27 : vector<1x8x128xf32> to vector<8x128xf32>
      %29 = vector.shape_cast %16 : vector<16x128xf32> to vector<2x8x128xf32>
      %cst_13 = arith.constant dense<0.000000e+00> : vector<8x128xf32>
      %30 = vector.multi_reduction <add>, %29, %cst_13 [0] : vector<2x8x128xf32> to vector<8x128xf32>
      %31 = arith.addf %28, %30 : vector<8x128xf32>
      %c0_14 = arith.constant 0 : index
      %c0_15 = arith.constant 0 : index
      %c0_16 = arith.constant 0 : index
      %32 = vector.load %arg4[%c0_14, %c0_15, %c0_16] : memref<1x8x128xf32, #tpu.memory_space<vmem>>, vector<1x8x128xf32>
      %33 = vector.shape_cast %32 : vector<1x8x128xf32> to vector<8x128xf32>
      %34 = vector.shape_cast %31 : vector<8x128xf32> to vector<1x8x128xf32>
      tpu.vector_store %arg4[%c0_14, %c0_15, %c0_16], %34 {strides = array<i32>} : memref<1x8x128xf32, #tpu.memory_space<vmem>>, vector<1x8x128xf32>,
    } else {
    }
    %true = arith.constant true
    %24 = arith.xori %21, %true : i1
    %25 = arith.extui %24 : i1 to i32
    %c0_i32_9 = arith.constant 0 : i32
    %26 = arith.cmpi ne, %25, %c0_i32_9 : i32
    scf.if %26 {
      %27 = tpu.iota {dimensions = array<i32: 0>} : vector<16x128xi32>
      %28 = vector.broadcast %17 : i32 to vector<16x128xi32>
      %29 = arith.addi %28, %27 : vector<16x128xi32>
      %30 = tpu.iota {dimensions = array<i32: 1>} : vector<16x128xi32>
      %c16_i32_10 = arith.constant 16 : i32
      %31 = vector.broadcast %c16_i32_10 : i32 to vector<16x128xi32>
      %32 = arith.cmpi slt, %29, %31 : vector<16x128xi32>
      %c16_i32_11 = arith.constant 16 : i32
      %33 = vector.broadcast %c16_i32_11 : i32 to vector<16x128xi32>
      %34 = arith.cmpi eq, %29, %33 : vector<16x128xi32>
      %c0_i32_12 = arith.constant 0 : i32
      %35 = vector.broadcast %c0_i32_12 : i32 to vector<16x128xi32>
      %36 = arith.cmpi slt, %30, %35 : vector<16x128xi32>
      %37 = arith.andi %34, %36 : vector<16x128xi1>
      %38 = arith.ori %32, %37 : vector<16x128xi1>
      %39 = vector.broadcast %18 : i1 to vector<16x128xi1>
      %40 = arith.andi %38, %39 : vector<16x128xi1>
      %cst_13 = arith.constant 0.000000e+00 : f32
      %41 = vector.broadcast %cst_13 : f32 to vector<16x128xf32>
      %42 = arith.select %40, %16, %41 : vector<16x128xi1>, vector<16x128xf32>
      %c0_14 = arith.constant 0 : index
      %c0_15 = arith.constant 0 : index
      %c0_16 = arith.constant 0 : index
      %43 = vector.load %arg4[%c0_14, %c0_15, %c0_16] : memref<1x8x128xf32, #tpu.memory_space<vmem>>, vector<1x8x128xf32>
      %44 = vector.shape_cast %43 : vector<1x8x128xf32> to vector<8x128xf32>
      %45 = vector.shape_cast %42 : vector<16x128xf32> to vector<2x8x128xf32>
      %cst_17 = arith.constant dense<0.000000e+00> : vector<8x128xf32>
      %46 = vector.multi_reduction <add>, %45, %cst_17 [0] : vector<2x8x128xf32> to vector<8x128xf32>
      %47 = arith.addf %44, %46 : vector<8x128xf32>
      %c0_18 = arith.constant 0 : index
      %c0_19 = arith.constant 0 : index
      %c0_20 = arith.constant 0 : index
      %48 = vector.load %arg4[%c0_18, %c0_19, %c0_20] : memref<1x8x128xf32, #tpu.memory_space<vmem>>, vector<1x8x128xf32>
      %49 = vector.shape_cast %48 : vector<1x8x128xf32> to vector<8x128xf32>
      %50 = vector.shape_cast %47 : vector<8x128xf32> to vector<1x8x128xf32>
      tpu.vector_store %arg4[%c0_18, %c0_19, %c0_20], %50 {strides = array<i32>} : memref<1x8x128xf32, #tpu.memory_space<vmem>>, vector<1x8x128xf32>,
    } else {
    }
    return
  }
  func.func @transform_0(%arg0: i32, %arg1: i32) -> (i32, i32) {
    %c0_i32 = arith.constant 0 : i32
    %c0_i32_0 = arith.constant 0 : i32
    return %arg1, %c0_i32 : i32, i32
  }
  func.func @transform_1(%arg0: i32, %arg1: i32) -> (i32, i32) {
    %c0_i32 = arith.constant 0 : i32
    %c0_i32_0 = arith.constant 0 : i32
    return %arg1, %c0_i32 : i32, i32
  }
  func.func @transform_2(%arg0: i32, %arg1: i32) -> (i32, i32, i32) {
    %c0_i32 = arith.constant 0 : i32
    %c0_i32_0 = arith.constant 0 : i32
    %c0_i32_1 = arith.constant 0 : i32
    return %arg0, %c0_i32, %c0_i32_0 : i32, i32, i32
  }
}

</mosaic_0001>

<llo_original>
// kernel: binary_cross_entropy_loss.1
$region0: #{binary_cross_entropy_loss.1}
  #allocation0 [shape = 'u32[]', space=smem, size = 0x4, offset = 0x4, fixed_abs, tag = 'smem constant byte address 0x4 - core index']
  #allocation1 [shape = 'u32[144,128]{1,0:T(1,128)}', space=vmem, size = 0x12000, scoped, tag = 'internal scratch']
  %s0 = inlined_call_operand.vmem [shape: f32[16,128], index: 0, kind: input, shape index: {}]
  %s1 = inlined_call_operand.vmem [shape: f32[16,128], index: 1, kind: input, shape index: {}]
  %s2 = inlined_call_operand.vmem [shape: f32[1,8,128], index: 2, kind: output, shape index: {}]
  %s3 = sld [smem:[#allocation0]]
  $region30: #{binary_cross_entropy_loss.1} parent=0
    _
  %s5 = ssub.s32 1, %s3
  %s6 = scalar_select 0, %s5, %s3
  // Predicated region
  $region2: #{binary_cross_entropy_loss.1} parent=0 // pred_check
    _
  $region3: #{binary_cross_entropy_loss.1} parent=0 // pred_check_branch
    %8 = sbr.rel (0) target = $region5
  $region4: #{binary_cross_entropy_loss.1} parent=0 // pred_region
    _
  $region5: #{binary_cross_entropy_loss.1} parent=0 // pred_fallthru
    _
  // Predicated region
  $region6: #{binary_cross_entropy_loss.1} parent=0 // pred_check
    _
  $region7: #{binary_cross_entropy_loss.1} parent=0 // pred_check_branch
    %10 = sbr.rel (0) target = $region9
  $region8: #{binary_cross_entropy_loss.1} parent=0 // pred_region
    _
  $region9: #{binary_cross_entropy_loss.1} parent=0 // pred_fallthru
    _
  %p11 = scmp.eq.s32.totalorder 0, 0
  // Predicated region
  $region10: #{binary_cross_entropy_loss.1} parent=0 // pred_check
    %p12 = pneg %p11
  $region11: #{binary_cross_entropy_loss.1} parent=0 // pred_check_branch
    %14 = sbr.rel (%p12) target = $region13
  $region12: #{binary_cross_entropy_loss.1} parent=0 // pred_region
    %15 = vst [vmem:[%s2] sm:$0xff] 0.0
  $region13: #{binary_cross_entropy_loss.1} parent=0 // pred_fallthru
    _
  %s16 = sadd.s32 0, 0
  %v17 = vld [vmem:[%s0] sm:$0xff]
  %v18 = vld [vmem:[%s0 + $0x8] sm:$0xff]
  %v19 = vld [vmem:[%s1] sm:$0xff]
  %v20 = vld [vmem:[%s1 + $0x8] sm:$0xff]
  %v21 = vmax.f32 %v17, 0.0
  %v22 = vmax.f32 %v18, 0.0
  %v23 = vmul.f32 %v17, %v19
  %v24 = vmul.f32 %v18, %v20
  %v25 = vsub.f32 %v21, %v23
  %v26 = vsub.f32 %v22, %v24
  %v27 = vand.u32 2147483647, %v17
  %v28 = vand.u32 2147483647, %v18
  %v29 = vsub.f32 0.0, %v27
  %v30 = vsub.f32 0.0, %v28
  %v31 = vmul.f32 %v29, 1.442695
  %v32 = vpow.pop %v31
  %v33 = vmul.f32 %v30, 1.442695
  %v34 = vpow.pop %v33
  %v35 = vadd.f32 %v32, 1.0
  %v36 = vlog2.pop %v35
  %v37 = vmul.f32 %v36, 0.6931472
  %v38 = vmul.f32 -0.5, %v32
  %v39 = vadd.f32 %v38, 1.0
  %v40 = vmul.f32 %v39, %v32
  %v41 = vand.u32 2147483647, %v32
  %vm42 = vcmp.lt.f32.partialorder %v41, 0.0004427343
  %v43 = vsel %vm42, %v40, %v37
  %v44 = vadd.f32 %v34, 1.0
  %v45 = vlog2.pop %v44
  %v46 = vmul.f32 %v45, 0.6931472
  %v47 = vmul.f32 -0.5, %v34
  %v48 = vadd.f32 %v47, 1.0
  %v49 = vmul.f32 %v48, %v34
  %v50 = vand.u32 2147483647, %v34
  %vm51 = vcmp.lt.f32.partialorder %v50, 0.0004427343
  %v52 = vsel %vm51, %v49, %v46
  %v53 = vadd.f32 %v25, %v43
  %v54 = vadd.f32 %v26, %v52
  %s55 = smul.u32 %s16, 16
  %p56 = scmp.lt.s32.totalorder %s16, 1
  %s57 = sadd.s32 %s55, 16
  %p58 = scmp.le.s32.totalorder %s57, 16
  %p59 = pnand %p56, %p58
  %p60 = pneg %p59
  // Predicated region
  $region14: #{binary_cross_entropy_loss.1} parent=0 // pred_check
    _
  $region15: #{binary_cross_entropy_loss.1} parent=0 // pred_check_branch
    %62 = sbr.rel (%p59) target = $region17
  $region16: #{binary_cross_entropy_loss.1} parent=0 // pred_region
    %v63 = vld [vmem:[%s2] sm:$0xff]
    %v64 = vadd.f32 %v53, %v54
    %v65 = vadd.f32 %v63, %v64
    %66 = vst [vmem:[%s2] sm:$0xff] %v65
  $region17: #{binary_cross_entropy_loss.1} parent=0 // pred_fallthru
    _
  %p67 = pneg %p60
  // Predicated region
  $region18: #{binary_cross_entropy_loss.1} parent=0 // pred_check
    _
  $region19: #{binary_cross_entropy_loss.1} parent=0 // pred_check_branch
    %69 = sbr.rel (%p60) target = $region21
  $region20: #{binary_cross_entropy_loss.1} parent=0 // pred_region
    %v70 = vlaneseq
    %v71 = vshrl.u32 %v70, 7
    %v72 = vadd.s32 %v71, 8
    %v73 = vstv %s55
    %v74 = vadd.s32 %v73, %v71
    %v75 = vadd.s32 %v73, %v72
    %v76 = vlaneseq
    %v77 = vand.u32 %v76, 127
    %vm78 = vcmp.lt.s32.totalorder %v74, 16
    %vm79 = vcmp.lt.s32.totalorder %v75, 16
    %vm80 = vcmp.eq.s32.totalorder %v74, 16
    %vm81 = vcmp.eq.s32.totalorder %v75, 16
    %vm82 = vcmp.lt.s32.totalorder %v77, 0
    %vm83 = vmand %vm80, %vm82
    %vm84 = vmand %vm81, %vm82
    %vm85 = vmor %vm78, %vm83
    %vm86 = vmor %vm79, %vm84
    %s87 = scalar_select %p56, 1, 0
    %v88 = vstv %s87
    %vm89 = vcmp.eq.s32.totalorder %v88, 1
    %vm90 = vmand %vm85, %vm89
    %vm91 = vmand %vm86, %vm89
    %v92 = vsel %vm90, %v53, 0.0
    %v93 = vsel %vm91, %v54, 0.0
    %v94 = vld [vmem:[%s2] sm:$0xff]
    %v95 = vadd.f32 %v92, %v93
    %v96 = vadd.f32 %v94, %v95
    %97 = vst [vmem:[%s2] sm:$0xff] %v96
  $region21: #{binary_cross_entropy_loss.1} parent=0 // pred_fallthru
    _
  // Predicated region
  $region22: #{binary_cross_entropy_loss.1} parent=0 // pred_check
    _
  $region23: #{binary_cross_entropy_loss.1} parent=0 // pred_check_branch
    %99 = sbr.rel (0) target = $region25
  $region24: #{binary_cross_entropy_loss.1} parent=0 // pred_region
    _
  $region25: #{binary_cross_entropy_loss.1} parent=0 // pred_fallthru
    _
  // Predicated region
  $region26: #{binary_cross_entropy_loss.1} parent=0 // pred_check
    _
  $region27: #{binary_cross_entropy_loss.1} parent=0 // pred_check_branch
    %101 = sbr.rel (0) target = $region29
  $region28: #{binary_cross_entropy_loss.1} parent=0 // pred_region
    _
  $region29: #{binary_cross_entropy_loss.1} parent=0 // pred_fallthru
    _

</llo_original>
